<compile_context>
chip_gen: v7x
topology: tpu7x:2x2x1
jax: 0.10.0
libtpu: 0.0.40
codegen_flags: <defaults>
</compile_context>

<pallas_src>
import functools

import jax
import jax.numpy as jnp
from jax.experimental import pallas as pl
from jax.experimental.pallas import tpu as pltpu


# ------------------------------ Pallas kernels ------------------------------

def _matmul_kernel(a_ref, b_ref, o_ref):
    # Stage 1: ConvTranspose2d(k, cngf, 4, 1, 0) on a 1x1 input == plain matmul.
    o_ref[...] = jnp.dot(a_ref[...], b_ref[...],
                         preferred_element_type=jnp.float32)


def _bn_relu_deconv_kernel(x_ref, g_ref, b_ref, w_ref, o_ref, pad_ref, *,
                           apply_tanh, eps=1e-5):
    """Fused BatchNorm2d(train stats) + ReLU + ConvTranspose2d(4, 2, 1) (+tanh).

    x_ref  : (N, H, W, Cin)        raw (pre-BN) channel-last input activation
    g_ref  : (1, 1, 1, Cin)        BN gamma
    b_ref  : (1, 1, 1, Cin)        BN beta
    w_ref  : (4, 4, Cout, Cin)     transposed-conv taps, indexed [kh, kw]
    o_ref  : (2, 2, N, H, W, Cout) parity-major output:
             o[ph, pw, n, a, b, :] == conv_out[n, 2a+ph, 2b+pw, :]
    pad_ref: (N, H+2, W+2, Cin)    VMEM scratch: BN+ReLU'd, zero-padded input
    """
    N, H, W, Cin = x_ref.shape
    Cout = o_ref.shape[-1]

    x = x_ref[...]

    # --- BatchNorm2d training-mode batch statistics (biased var), in-kernel ---
    cnt = float(N * H * W)
    mean = jnp.sum(x, axis=(0, 1, 2), keepdims=True) / cnt
    var = jnp.sum(x * x, axis=(0, 1, 2), keepdims=True) / cnt - mean * mean
    scale = g_ref[...] * jax.lax.rsqrt(var + eps)
    shift = b_ref[...] - mean * scale
    y = jnp.maximum(x * scale + shift, 0.0)

    # --- zero-pad (conv-transpose pad=1) AFTER BN+ReLU, kept in VMEM ---
    pad_ref[...] = jnp.zeros_like(pad_ref)
    pad_ref[:, 1:H + 1, 1:W + 1, :] = y

    # --- polyphase transposed conv: 4 output parities x 4 dense taps each ---
    # output row oh = 2a + ph gets taps kh with parity (1-ph); tap (dr, dc) reads
    # the padded input window starting at (ph+dr, pw+dc) and uses weight
    # (kh, kw) = (3-ph-2dr, 3-pw-2dc).  No multiplications by structural zeros.
    for ph in range(2):
        for pw in range(2):
            acc = jnp.zeros((N * H, W, Cout), jnp.float32)
            for dr in range(2):
                for dc in range(2):
                    r0, c0 = ph + dr, pw + dc
                    kh, kw = 3 - ph - 2 * dr, 3 - pw - 2 * dc
                    xs = pad_ref[:, r0:r0 + H, c0:c0 + W, :]      # (N, H, W, Cin)
                    xs = xs.reshape(N * H, W, Cin)                # leading-dim merge
                    wt = jnp.broadcast_to(w_ref[kh, kw], (N * H, Cout, Cin))
                    acc = acc + jnp.einsum('bwc,boc->bwo', xs, wt,
                                           preferred_element_type=jnp.float32)
            if apply_tanh:
                acc = jnp.tanh(acc)
            o_ref[ph, pw] = acc.reshape(N, H, W, Cout)


# ------------------------------ Pallas wrappers ------------------------------

def _full_spec(shape):
    zeros = (0,) * len(shape)
    return pl.BlockSpec(shape, lambda i: zeros)


_COMPILER_PARAMS = pltpu.CompilerParams(dimension_semantics=("arbitrary",))


def pallas_matmul(a, b):
    """(M, K) @ (K, N) f32 matmul; block == full array (shapes here are tiny)."""
    M, K = a.shape
    _, Np = b.shape
    return pl.pallas_call(
        _matmul_kernel,
        out_shape=jax.ShapeDtypeStruct((M, Np), jnp.float32),
        grid=(1,),
        in_specs=[_full_spec((M, K)), _full_spec((K, Np))],
        out_specs=_full_spec((M, Np)),
        compiler_params=_COMPILER_PARAMS,
    )(a.astype(jnp.float32), b.astype(jnp.float32))


def fused_bn_relu_deconv(x_nhwc, gamma, beta, w_ct, apply_tanh):
    """BN(train) + ReLU + ConvTranspose2d(Cin, Cout, 4, 2, 1) (+ optional tanh).

    x_nhwc: (N, H, W, Cin) raw pre-BN activation; w_ct: (Cin, Cout, 4, 4) torch
    layout.  Returns the raw (or tanh'd) conv output, channel-last (N, 2H, 2W, Cout).
    """
    N, H, W, Cin = x_nhwc.shape
    Cout = w_ct.shape[1]
    w_taps = jnp.transpose(w_ct, (2, 3, 1, 0))          # (kh, kw, Cout, Cin)
    kernel = functools.partial(_bn_relu_deconv_kernel, apply_tanh=apply_tanh)
    out = pl.pallas_call(
        kernel,
        out_shape=jax.ShapeDtypeStruct((2, 2, N, H, W, Cout), jnp.float32),
        grid=(1,),
        in_specs=[_full_spec((N, H, W, Cin)),
                  _full_spec((1, 1, 1, Cin)),
                  _full_spec((1, 1, 1, Cin)),
                  _full_spec((4, 4, Cout, Cin))],
        out_specs=_full_spec((2, 2, N, H, W, Cout)),
        scratch_shapes=[pltpu.VMEM((N, H + 2, W + 2, Cin), jnp.float32)],
        compiler_params=_COMPILER_PARAMS,
    )(x_nhwc.astype(jnp.float32),
      gamma.reshape(1, 1, 1, Cin).astype(jnp.float32),
      beta.reshape(1, 1, 1, Cin).astype(jnp.float32),
      w_taps.astype(jnp.float32))
    # parity-major (ph, pw, n, a, b, c) -> (n, 2a+ph, 2b+pw, c); tiny boundary op.
    return jnp.transpose(out, (2, 3, 0, 4, 1, 5)).reshape(N, 2 * H, 2 * W, Cout)


def decoder_forward(x, params):
    """Pallas implementation of Decoder.forward for isize=16 (3 deconv stages)."""
    w1, g1, b1, w2, g2, b2, w3 = params
    N = x.shape[0]
    K, C1 = w1.shape[0], w1.shape[1]

    # stage 1: ConvTranspose2d(k, cngf, 4, 1, 0) on a 1x1 input == one matmul.
    # weight -> (ci, kh, kw, co) so the matmul output is already channel-last.
    w1m = jnp.transpose(w1, (0, 2, 3, 1)).reshape(K, 16 * C1)
    h1 = pallas_matmul(x.reshape(N, K), w1m).reshape(N, 4, 4, C1)   # raw, NHWC

    # stage 2: fused BN1 + ReLU + ConvTranspose2d(C1, C2, 4, 2, 1)  (raw output)
    h2 = fused_bn_relu_deconv(h1, g1, b1, w2, apply_tanh=False)

    # stage 3: fused BN2 + ReLU + ConvTranspose2d(C2, nc, 4, 2, 1) + Tanh
    h3 = fused_bn_relu_deconv(h2, g2, b2, w3, apply_tanh=True)

    # model boundary only: channel-last -> NCHW to match the PyTorch module.
    return jnp.transpose(h3, (0, 3, 1, 2))


# ------------------------------ JAX reference --------------------------------

def _ref_conv_transpose(x, w, stride, pad):
    wf = jnp.transpose(w[:, :, ::-1, ::-1], (1, 0, 2, 3))
    k = w.shape[2]
    p = k - 1 - pad
    return jax.lax.conv_general_dilated(
        x, wf, window_strides=(1, 1), padding=[(p, p), (p, p)],
        lhs_dilation=(stride, stride),
        dimension_numbers=('NCHW', 'OIHW', 'NCHW'),
        precision=jax.lax.Precision.HIGHEST)


def _ref_bn_relu(x, g, b, eps=1e-5):
    mean = x.mean(axis=(0, 2, 3), keepdims=True)
    var = x.var(axis=(0, 2, 3), keepdims=True)
    y = (x - mean) * jax.lax.rsqrt(var + eps)
    y = y * g.reshape(1, -1, 1, 1) + b.reshape(1, -1, 1, 1)
    return jnp.maximum(y, 0.0)


def ref_forward(x, params):
    w1, g1, b1, w2, g2, b2, w3 = params
    h = _ref_conv_transpose(x, w1, 1, 0)
    h = _ref_bn_relu(h, g1, b1)
    h = _ref_conv_transpose(h, w2, 2, 1)
    h = _ref_bn_relu(h, g2, b2)
    h = _ref_conv_transpose(h, w3, 2, 1)
    return jnp.tanh(h)


# ---------------------------------- main --------------------------------------

if __name__ == "__main__":
    # Small config consistent with the module: isize=16, nc=3, latent k=16, ngf=8
    isize, nc, k, ngf, N = 16, 3, 16, 8, 2
    cngf, tisize = ngf // 2, 4
    while tisize != isize:
        cngf *= 2
        tisize *= 2  # -> cngf = 16 for isize=16, ngf=8

    key = jax.random.PRNGKey(0)
    kx, k1, k2, k3, k4, k5, k6, k7 = jax.random.split(key, 8)

    x = jax.random.normal(kx, (N, k, 1, 1), jnp.float32)

    # deterministic synthetic parameters (PyTorch ConvTranspose2d weight layout)
    w1 = 0.1 * jax.random.normal(k1, (k, cngf, 4, 4), jnp.float32)
    g1 = 1.0 + 0.1 * jax.random.normal(k2, (cngf,), jnp.float32)
    b1 = 0.1 * jax.random.normal(k3, (cngf,), jnp.float32)
    w2 = 0.1 * jax.random.normal(k4, (cngf, cngf // 2, 4, 4), jnp.float32)
    g2 = 1.0 + 0.1 * jax.random.normal(k5, (cngf // 2,), jnp.float32)
    b2 = 0.1 * jax.random.normal(k6, (cngf // 2,), jnp.float32)
    w3 = 0.1 * jax.random.normal(k7, (cngf // 2, nc, 4, 4), jnp.float32)
    params = (w1, g1, b1, w2, g2, b2, w3)

    out = jax.block_until_ready(decoder_forward(x, params))
    assert out.shape == (N, nc, isize, isize), out.shape

    ref = jax.block_until_ready(ref_forward(x, params))
    err = float(jnp.max(jnp.abs(out - ref)))
    assert jnp.allclose(out, ref, atol=1e-2, rtol=1e-2), f"max abs err {err}"

    print("KERNEL_OK")
</pallas_src>

<mosaic_0001>
module attributes {stable_mosaic.version = 11 : i64} {
  func.func @_matmul_kernel(%arg0: i32, %arg1: memref<2x16xf32, #tpu.memory_space<vmem>>, %arg2: memref<16x256xf32, #tpu.memory_space<vmem>>, %arg3: memref<2x256xf32, #tpu.memory_space<vmem>>) attributes {dimension_semantics = [#tpu.dimension_semantics<arbitrary>], iteration_bounds = array<i64: 1>, scalar_prefetch = 0 : i64, scratch_operands = 0 : i64, tpu.core_type = #tpu.core_type<tc>, window_params = [{pipeline_mode = #tpu.pipeline_mode<synchronous>, transform_indices = @transform_0, window_bounds = array<i64: 2, 16>}, {pipeline_mode = #tpu.pipeline_mode<synchronous>, transform_indices = @transform_1, window_bounds = array<i64: 16, 256>}, {pipeline_mode = #tpu.pipeline_mode<synchronous>, transform_indices = @transform_2, window_bounds = array<i64: 2, 256>}]} {
    %c0 = arith.constant 0 : index
    %c0_0 = arith.constant 0 : index
    %0 = vector.load %arg1[%c0, %c0_0] : memref<2x16xf32, #tpu.memory_space<vmem>>, vector<2x16xf32>
    %c0_1 = arith.constant 0 : index
    %c0_2 = arith.constant 0 : index
    %1 = vector.load %arg2[%c0_1, %c0_2] : memref<16x256xf32, #tpu.memory_space<vmem>>, vector<16x256xf32>
    %cst = arith.constant dense<0.000000e+00> : vector<2x256xf32>
    %2 = tpu.matmul %0, %1, %cst {dimension_numbers = #tpu.dot_dimension_numbers<[1], [0], [0], [1], [0, 0, 1, 1], [], []>} : vector<2x16xf32>, vector<16x256xf32>, vector<2x256xf32> -> vector<2x256xf32>
    %c0_3 = arith.constant 0 : index
    %c0_4 = arith.constant 0 : index
    %3 = vector.load %arg3[%c0_3, %c0_4] : memref<2x256xf32, #tpu.memory_space<vmem>>, vector<2x256xf32>
    tpu.vector_store %arg3[%c0_3, %c0_4], %2 {strides = array<i32>} : memref<2x256xf32, #tpu.memory_space<vmem>>, vector<2x256xf32>,
    return
  }
  func.func @transform_0(%arg0: i32) -> (i32, i32) {
    %c0_i32 = arith.constant 0 : i32
    %c0_i32_0 = arith.constant 0 : i32
    %c0_i32_1 = arith.constant 0 : i32
    return %c0_i32, %c0_i32_0 : i32, i32
  }
  func.func @transform_1(%arg0: i32) -> (i32, i32) {
    %c0_i32 = arith.constant 0 : i32
    %c0_i32_0 = arith.constant 0 : i32
    %c0_i32_1 = arith.constant 0 : i32
    return %c0_i32, %c0_i32_0 : i32, i32
  }
  func.func @transform_2(%arg0: i32) -> (i32, i32) {
    %c0_i32 = arith.constant 0 : i32
    %c0_i32_0 = arith.constant 0 : i32
    %c0_i32_1 = arith.constant 0 : i32
    return %c0_i32, %c0_i32_0 : i32, i32
  }
}

</mosaic_0001>

<llo_original>
// kernel: tpu_custom_call.1
$region0: #{tpu_custom_call.1}
  #allocation0 [shape = 'u32[]', space=smem, size = 0x4, offset = 0x4, fixed_abs, tag = 'smem constant byte address 0x4 - core index']
  #allocation1 [shape = 'u32[144,128]{1,0:T(1,128)}', space=vmem, size = 0x12000, scoped, tag = 'internal scratch']
  %s0 = inlined_call_operand.hbm [shape: f32[2,16], index: 0, kind: input, shape index: {}]
  %s1 = inlined_call_operand.hbm [shape: f32[16,256], index: 1, kind: input, shape index: {}]
  %s2 = inlined_call_operand.hbm [shape: f32[2,256], index: 2, kind: output, shape index: {}]
  %s3 = sld [smem:[#allocation0]]
  $region26: #{tpu_custom_call.1} parent=0
    _
  %s5 = ssub.s32 1, %s3
  %s6 = scalar_select 0, %s5, %s3
  $region1: #{tpu_custom_call.1} parent=0
    #allocation2 [shape = 'u8[1024]{0}', space=vmem, size = 0x400, scoped, tag = 'input window, operand 0, single buffered']
    #allocation3 [shape = 's32[1]{0}', space=sflag, size = 0x4, scoped, tag = 'scoped memory for tpu_custom_call.1']
    #allocation4 [shape = 's32[1]{0}', space=sflag, size = 0x4, scoped, tag = 'scoped memory for tpu_custom_call.1']
    #allocation5 [shape = 'u8[16384]{0}', space=vmem, size = 0x4000, scoped, tag = 'input window, operand 1, single buffered']
    #allocation6 [shape = 's32[1]{0}', space=sflag, size = 0x4, scoped, tag = 'scoped memory for tpu_custom_call.1']
    #allocation7 [shape = 'u8[2048]{0}', space=vmem, size = 0x800, scoped, tag = 'output window, operand 0, single buffered']
    %7 = vsyncpa [#allocation3], 0
    %8 = vsyncpa [#allocation6], 0
    %9 = vsyncpa [#allocation4], 0
    // Predicated region
    $region2: #{tpu_custom_call.1} parent=1 // pred_check
      _
    $region3: #{tpu_custom_call.1} parent=1 // pred_check_branch
      %11 = sbr.rel (0) target = $region5
    $region4: #{tpu_custom_call.1} parent=1 // pred_region
      %s13 = ssub.s32 32, 32
      %14 = vsyncadd [#allocation3], %s13
      %s16 = sshll.u32 [#allocation2], 4
      %s17 = int_to_ptr.vmem [resolvable:$true] %s16
      %19 = dma.hbm_to_vmem [thread:$0]  %s0, 32, %s17, [#allocation3]
    $region5: #{tpu_custom_call.1} parent=1 // pred_fallthru
      _
    // Predicated region
    $region6: #{tpu_custom_call.1} parent=1 // pred_check
      _
    $region7: #{tpu_custom_call.1} parent=1 // pred_check_branch
      %21 = sbr.rel (0) target = $region9
    $region8: #{tpu_custom_call.1} parent=1 // pred_region
      %s23 = ssub.s32 512, 512
      %24 = vsyncadd [#allocation6], %s23
      %s25 = sshll.u32 [#allocation5], 4
      %s26 = int_to_ptr.vmem [resolvable:$true] %s25
      %31 = dma.hbm_to_vmem [thread:$0]  %s1, 512, %s26, [#allocation6], 256, 256, 16
    $region9: #{tpu_custom_call.1} parent=1 // pred_fallthru
      _
    // Predicated region
    $region10: #{tpu_custom_call.1} parent=1 // pred_check
      _
    $region11: #{tpu_custom_call.1} parent=1 // pred_check_branch
      %33 = sbr.rel (0) target = $region13
    $region12: #{tpu_custom_call.1} parent=1 // pred_region
      %34 = dma.done [#allocation3], 32
    $region13: #{tpu_custom_call.1} parent=1 // pred_fallthru
      _
    // Predicated region
    $region14: #{tpu_custom_call.1} parent=1 // pred_check
      _
    $region15: #{tpu_custom_call.1} parent=1 // pred_check_branch
      %36 = sbr.rel (0) target = $region17
    $region16: #{tpu_custom_call.1} parent=1 // pred_region
      %37 = dma.done [#allocation6], 512
    $region17: #{tpu_custom_call.1} parent=1 // pred_fallthru
      _
    %v38 = vld [vmem:[#allocation2] sm:$0x3]
    %v39 = vld [vmem:[#allocation5] sm:$0xff]
    %v40 = vld [vmem:[#allocation5 + $0x8] sm:$0xff]
    %v41 = vld [vmem:[#allocation5 + $0x10] sm:$0xff]
    %v42 = vld [vmem:[#allocation5 + $0x18] sm:$0xff]
    %vm43 = vcmask 130048
    %v45 = vsel %vm43, %v38, 0
    %47 = vmatprep.subr.mxu0 %v40
    %48 = vmatpush1.msra.mxu0 %v39
    %49 = vmatprep.subr.mxu0 %v42
    %50 = vmatpush1.msra.mxu0 %v41
    %51 = vmatprep.subr.mxu0 0.0
    %52 = vmatpush1.msra.mxu0 0.0
    %53 = vmatprep.subr.mxu0 0.0
    %54 = vmatpush1.msra.mxu0 0.0
    %55 = vmatprep.subr.mxu0 0.0
    %56 = vmatpush1.msra.mxu0 0.0
    %57 = vmatprep.subr.mxu0 0.0
    %58 = vmatpush1.msra.mxu0 0.0
    %59 = vmatprep.subr.mxu0 0.0
    %60 = vmatpush1.msra.mxu0 0.0
    %61 = vmatprep.subr.mxu0 0.0
    %62 = vmatpush1.msra.mxu0 0.0
    %63 = vmatprep.subr.mxu0 0.0
    %64 = vmatpush1.msra.mxu0 0.0
    %65 = vmatprep.subr.mxu0 0.0
    %66 = vmatpush1.msra.mxu0 0.0
    %67 = vmatprep.subr.mxu0 0.0
    %68 = vmatpush1.msra.mxu0 0.0
    %69 = vmatprep.subr.mxu0 0.0
    %70 = vmatpush1.msra.mxu0 0.0
    %71 = vmatprep.subr.mxu0 0.0
    %72 = vmatpush1.msra.mxu0 0.0
    %73 = vmatprep.subr.mxu0 0.0
    %74 = vmatpush1.msra.mxu0 0.0
    %75 = vmatprep.subr.mxu0 0.0
    %76 = vmatpush1.msra.mxu0 0.0
    %77 = vmatprep.subr.mxu0 0.0
    %78 = vmatpush1.msra.mxu0 0.0
    %79 = vmatprep.subr.mxu0 0.0
    %80 = vmatpush1.msra.mxu0 0.0
    %81 = vmatprep.subr.mxu0 0.0
    %82 = vmatpush1.msra.mxu0 0.0
    %83 = vmatprep.subr.mxu0 0.0
    %84 = vmatpush1.msra.mxu0 0.0
    %85 = vmatprep.subr.mxu0 0.0
    %86 = vmatpush1.msra.mxu0 0.0
    %87 = vmatprep.subr.mxu0 0.0
    %88 = vmatpush1.msra.mxu0 0.0
    %89 = vmatprep.subr.mxu0 0.0
    %90 = vmatpush1.msra.mxu0 0.0
    %91 = vmatprep.subr.mxu0 0.0
    %92 = vmatpush1.msra.mxu0 0.0
    %93 = vmatprep.subr.mxu0 0.0
    %94 = vmatpush1.msra.mxu0 0.0
    %95 = vmatprep.subr.mxu0 0.0
    %96 = vmatpush1.msra.mxu0 0.0
    %97 = vmatprep.subr.mxu0 0.0
    %98 = vmatpush1.msra.mxu0 0.0
    %99 = vmatprep.subr.mxu0 0.0
    %100 = vmatpush1.msra.mxu0 0.0
    %101 = vmatprep.subr.mxu0 0.0
    %102 = vmatpush1.msra.mxu0 0.0
    %103 = vmatprep.subr.mxu0 0.0
    %104 = vmatpush1.msra.mxu0 0.0
    %105 = vmatprep.subr.mxu0 0.0
    %106 = vmatpush1.msra.mxu0 0.0
    %107 = vmatprep.subr.mxu0 0.0
    %108 = vmatpush1.msra.mxu0 0.0
    %109 = vmatprep.subr.mxu0 0.0
    %110 = vmatpush1.msra.mxu0 0.0
    %111 = vmatprep.mubr.f32.mxu0 0.0
    %112 = vmatmul.mubr.f32.gmra.mrb[0].mxu0 %v45
    %v113 = vpop.f32.mrb[0].mxu0
    %v114 = vadd.f32 0.0, %v113
    %v115 = vpop.f32.mrb[0].mxu0
    %v116 = vadd.f32 0.0, %v115
    %117 = vdwg.mxu0
    %v120 = vcombine.low %v114, %v116
    %v122 = vunpack.c.l.s4 1983009808
    %v123 = vunpack.c.0.s8 %v122
    %v124 = vlaneseq
    %v125 = vshrl.u32 %v124, 7
    %v126 = vsub.s32 %v123, %v125
    %v127 = vrot.slane %v120, %v126
    %129 = vst [vmem:[#allocation7] sm:$0xf] %v127
    // Predicated region
    $region18: #{tpu_custom_call.1} parent=1 // pred_check
      _
    $region19: #{tpu_custom_call.1} parent=1 // pred_check_branch
      %131 = sbr.rel (0) target = $region21
    $region20: #{tpu_custom_call.1} parent=1 // pred_region
      %s133 = ssub.s32 64, 64
      %134 = vsyncadd [#allocation4], %s133
      %s136 = sshll.u32 [#allocation7], 4
      %s137 = int_to_ptr.vmem [resolvable:$true] %s136
      %139 = dma.vmem_to_hbm [thread:$0]  %s137, 64, %s2, [#allocation4]
    $region21: #{tpu_custom_call.1} parent=1 // pred_fallthru
      _
    // Predicated region
    $region22: #{tpu_custom_call.1} parent=1 // pred_check
      _
    $region23: #{tpu_custom_call.1} parent=1 // pred_check_branch
      %141 = sbr.rel (0) target = $region25
    $region24: #{tpu_custom_call.1} parent=1 // pred_region
      %142 = dma.done [#allocation4], 64
    $region25: #{tpu_custom_call.1} parent=1 // pred_fallthru
      _
    %143 = vsyncpa [#allocation3], 1
    %144 = vsyncpa [#allocation6], 1
    %145 = vsyncpa [#allocation4], 1

</llo_original>
